<compile_context>
chip_gen: v7x
topology: tpu7x:2x2x1
jax: 0.10.0
libtpu: 0.0.40
codegen_flags: <defaults>
</compile_context>

<pallas_src>
import jax
import jax.numpy as jnp
from jax import lax
from jax.experimental import pallas as pl
from jax.experimental.pallas import tpu as pltpu


# ----------------------------------------------------------------------------
# Kernel: zero-fill this (TILE_N, C) output tile, then scatter the rows of x
# whose target index falls inside the tile.  Pure store-path work, no MXU.
# ----------------------------------------------------------------------------
def up_pool_kernel(perm_ref, x_ref, o_ref):
    """perm_ref: (K,) int32 in SMEM (scalar prefetch)
    x_ref   : (K, C) in VMEM, grid-invariant (DMA'd once)
    o_ref   : (TILE_N, C) output tile in VMEM
    """
    tile_n = o_ref.shape[0]
    k = x_ref.shape[0]
    base = pl.program_id(0) * tile_n

    # Explicit zero-fill: rows not named in perm must be exactly zero.
    o_ref[...] = jnp.zeros_like(o_ref)

    def body(j, carry):
        local = perm_ref[j] - base
        # Only rows landing in this tile are written; sequential j-order gives
        # torch's last-write-wins semantics for (hypothetical) duplicates.
        @pl.when(jnp.logical_and(local >= 0, local < tile_n))
        def _():
            o_ref[pl.ds(local, 1), :] = x_ref[pl.ds(j, 1), :]

        return carry

    # K is static; unroll small trip counts for LLO scheduling visibility.
    lax.fori_loop(0, k, body, 0, unroll=(k if k <= 16 else 8))


# ----------------------------------------------------------------------------
# Wrapper: matches UpPool.forward(x, res, perm)
# ----------------------------------------------------------------------------
def _pick_tile_n(n, c, itemsize):
    """Largest sublane-aligned output tile whose double-buffered footprint sits
    comfortably inside the tightest generation's scoped VMEM (v7x)."""
    budget = 4 * 1024 * 1024  # bytes per output buffer (x2 for double-buffer)
    t = budget // max(1, c * itemsize)
    if t >= n or n <= 8:
        return n
    return max(8, (t // 8) * 8)


def up_pool(x, res, perm, *, tile_n=None):
    """Returns zeros_like(res) with rows `perm` set to `x` (single Pallas call)."""
    n, c = res.shape
    k, cx = x.shape
    assert cx == c, "x and res feature dims must match"
    dtype = res.dtype

    if tile_n is None:
        tile_n = _pick_tile_n(n, c, jnp.dtype(dtype).itemsize)
    if tile_n < n:
        assert tile_n % 8 == 0, "partial-N tiles must be sublane (8) aligned"

    grid_spec = pltpu.PrefetchScalarGridSpec(
        num_scalar_prefetch=1,                 # perm -> SMEM
        grid=(pl.cdiv(n, tile_n),),
        # x is grid-invariant: DMA'd once, resident across all output tiles.
        in_specs=[pl.BlockSpec((k, c), lambda i, perm_ref: (0, 0))],
        out_specs=pl.BlockSpec((tile_n, c), lambda i, perm_ref: (i, 0)),
    )
    return pl.pallas_call(
        up_pool_kernel,
        out_shape=jax.ShapeDtypeStruct((n, c), dtype),
        grid_spec=grid_spec,
        compiler_params=pltpu.CompilerParams(
            dimension_semantics=("parallel",),  # independent row tiles -> 2 TCs on v7x
        ),
    )(perm.astype(jnp.int32), x.astype(dtype))


# ----------------------------------------------------------------------------
if __name__ == "__main__":
    # Shapes consistent with the graph U-Net context: 16 nodes, hidden=10,
    # pool_ratio=0.5 -> 8 pooled nodes being un-pooled back to 16.
    N_NODES, K_POOLED, HIDDEN = 16, 8, 10

    key = jax.random.PRNGKey(0)
    k_x, k_res, k_perm = jax.random.split(key, 3)

    x = jax.random.normal(k_x, (K_POOLED, HIDDEN), jnp.float32)    # pooled features
    res = jax.random.normal(k_res, (N_NODES, HIDDEN), jnp.float32) # skip tensor (shape donor)
    perm = jax.random.permutation(k_perm, N_NODES)[:K_POOLED].astype(jnp.int32)

    # tile_n=8 exercises the tiled / "parallel" grid path (grid=(2,)).
    up = up_pool(x, res, perm, tile_n=8)
    jax.block_until_ready(up)

    # Pure-JAX reference of the torch semantics: zeros_like(res); up[perm] = x
    ref = jnp.zeros_like(res).at[perm].set(x)

    assert up.shape == res.shape and up.dtype == res.dtype
    assert jnp.array_equal(up, ref), "UpPool scatter mismatch"
    # Rows not in perm must be exactly zero.
    mask = jnp.ones((N_NODES,), bool).at[perm].set(False)
    assert jnp.all(up[mask] == 0.0)

    print("KERNEL_OK")
</pallas_src>

<mosaic_0001>
module attributes {stable_mosaic.version = 11 : i64} {
  func.func @up_pool_kernel(%arg0: i32, %arg1: memref<8xi32, #tpu.memory_space<smem>>, %arg2: memref<8x10xf32, #tpu.memory_space<vmem>>, %arg3: memref<8x10xf32, #tpu.memory_space<vmem>>) attributes {dimension_semantics = [#tpu.dimension_semantics<parallel>], iteration_bounds = array<i64: 2>, scalar_prefetch = 1 : i64, scratch_operands = 0 : i64, tpu.core_type = #tpu.core_type<tc>, window_params = [{pipeline_mode = #tpu.pipeline_mode<synchronous>, transform_indices = @transform_0, window_bounds = array<i64: 8, 10>}, {transform_indices = @transform_1, window_bounds = array<i64: 8, 10>}]} {
    %c8_i32 = arith.constant 8 : i32
    %0 = arith.muli %arg0, %c8_i32 : i32
    %cst = arith.constant 0.000000e+00 : f32
    %1 = vector.broadcast %cst : f32 to vector<8x10xf32>
    %c0 = arith.constant 0 : index
    %c0_0 = arith.constant 0 : index
    %2 = vector.load %arg3[%c0, %c0_0] : memref<8x10xf32, #tpu.memory_space<vmem>>, vector<8x10xf32>
    tpu.vector_store %arg3[%c0, %c0_0], %1 {strides = array<i32>} : memref<8x10xf32, #tpu.memory_space<vmem>>, vector<8x10xf32>,
    %c0_i32 = arith.constant 0 : i32
    %3 = arith.index_cast %c0_i32 : i32 to index
    %4 = memref.load %arg1[%3] : memref<8xi32, #tpu.memory_space<smem>>
    %5 = arith.subi %4, %0 : i32
    %c0_i32_1 = arith.constant 0 : i32
    %6 = arith.cmpi sge, %5, %c0_i32_1 : i32
    %c8_i32_2 = arith.constant 8 : i32
    %7 = arith.cmpi slt, %5, %c8_i32_2 : i32
    %8 = arith.andi %6, %7 : i1
    %9 = arith.extui %8 : i1 to i32
    %c0_i32_3 = arith.constant 0 : i32
    %10 = arith.cmpi ne, %9, %c0_i32_3 : i32
    scf.if %10 {
      %67 = arith.index_cast %c0_i32 : i32 to index
      %c0_26 = arith.constant 0 : index
      %68 = vector.load %arg2[%67, %c0_26] : memref<8x10xf32, #tpu.memory_space<vmem>>, vector<1x10xf32>
      %69 = arith.index_cast %5 : i32 to index
      %c0_27 = arith.constant 0 : index
      %70 = vector.load %arg3[%69, %c0_27] : memref<8x10xf32, #tpu.memory_space<vmem>>, vector<1x10xf32>
      tpu.vector_store %arg3[%69, %c0_27], %68 {strides = array<i32>} : memref<8x10xf32, #tpu.memory_space<vmem>>, vector<1x10xf32>,
    } else {
    }
    %c1_i32 = arith.constant 1 : i32
    %11 = arith.index_cast %c1_i32 : i32 to index
    %12 = memref.load %arg1[%11] : memref<8xi32, #tpu.memory_space<smem>>
    %13 = arith.subi %12, %0 : i32
    %c0_i32_4 = arith.constant 0 : i32
    %14 = arith.cmpi sge, %13, %c0_i32_4 : i32
    %c8_i32_5 = arith.constant 8 : i32
    %15 = arith.cmpi slt, %13, %c8_i32_5 : i32
    %16 = arith.andi %14, %15 : i1
    %17 = arith.extui %16 : i1 to i32
    %c0_i32_6 = arith.constant 0 : i32
    %18 = arith.cmpi ne, %17, %c0_i32_6 : i32
    scf.if %18 {
      %67 = arith.index_cast %c1_i32 : i32 to index
      %c0_26 = arith.constant 0 : index
      %68 = vector.load %arg2[%67, %c0_26] : memref<8x10xf32, #tpu.memory_space<vmem>>, vector<1x10xf32>
      %69 = arith.index_cast %13 : i32 to index
      %c0_27 = arith.constant 0 : index
      %70 = vector.load %arg3[%69, %c0_27] : memref<8x10xf32, #tpu.memory_space<vmem>>, vector<1x10xf32>
      tpu.vector_store %arg3[%69, %c0_27], %68 {strides = array<i32>} : memref<8x10xf32, #tpu.memory_space<vmem>>, vector<1x10xf32>,
    } else {
    }
    %c2_i32 = arith.constant 2 : i32
    %19 = arith.index_cast %c2_i32 : i32 to index
    %20 = memref.load %arg1[%19] : memref<8xi32, #tpu.memory_space<smem>>
    %21 = arith.subi %20, %0 : i32
    %c0_i32_7 = arith.constant 0 : i32
    %22 = arith.cmpi sge, %21, %c0_i32_7 : i32
    %c8_i32_8 = arith.constant 8 : i32
    %23 = arith.cmpi slt, %21, %c8_i32_8 : i32
    %24 = arith.andi %22, %23 : i1
    %25 = arith.extui %24 : i1 to i32
    %c0_i32_9 = arith.constant 0 : i32
    %26 = arith.cmpi ne, %25, %c0_i32_9 : i32
    scf.if %26 {
      %67 = arith.index_cast %c2_i32 : i32 to index
      %c0_26 = arith.constant 0 : index
      %68 = vector.load %arg2[%67, %c0_26] : memref<8x10xf32, #tpu.memory_space<vmem>>, vector<1x10xf32>
      %69 = arith.index_cast %21 : i32 to index
      %c0_27 = arith.constant 0 : index
      %70 = vector.load %arg3[%69, %c0_27] : memref<8x10xf32, #tpu.memory_space<vmem>>, vector<1x10xf32>
      tpu.vector_store %arg3[%69, %c0_27], %68 {strides = array<i32>} : memref<8x10xf32, #tpu.memory_space<vmem>>, vector<1x10xf32>,
    } else {
    }
    %c3_i32 = arith.constant 3 : i32
    %27 = arith.index_cast %c3_i32 : i32 to index
    %28 = memref.load %arg1[%27] : memref<8xi32, #tpu.memory_space<smem>>
    %29 = arith.subi %28, %0 : i32
    %c0_i32_10 = arith.constant 0 : i32
    %30 = arith.cmpi sge, %29, %c0_i32_10 : i32
    %c8_i32_11 = arith.constant 8 : i32
    %31 = arith.cmpi slt, %29, %c8_i32_11 : i32
    %32 = arith.andi %30, %31 : i1
    %33 = arith.extui %32 : i1 to i32
    %c0_i32_12 = arith.constant 0 : i32
    %34 = arith.cmpi ne, %33, %c0_i32_12 : i32
    scf.if %34 {
      %67 = arith.index_cast %c3_i32 : i32 to index
      %c0_26 = arith.constant 0 : index
      %68 = vector.load %arg2[%67, %c0_26] : memref<8x10xf32, #tpu.memory_space<vmem>>, vector<1x10xf32>
      %69 = arith.index_cast %29 : i32 to index
      %c0_27 = arith.constant 0 : index
      %70 = vector.load %arg3[%69, %c0_27] : memref<8x10xf32, #tpu.memory_space<vmem>>, vector<1x10xf32>
      tpu.vector_store %arg3[%69, %c0_27], %68 {strides = array<i32>} : memref<8x10xf32, #tpu.memory_space<vmem>>, vector<1x10xf32>,
    } else {
    }
    %c4_i32 = arith.constant 4 : i32
    %35 = arith.index_cast %c4_i32 : i32 to index
    %36 = memref.load %arg1[%35] : memref<8xi32, #tpu.memory_space<smem>>
    %37 = arith.subi %36, %0 : i32
    %c0_i32_13 = arith.constant 0 : i32
    %38 = arith.cmpi sge, %37, %c0_i32_13 : i32
    %c8_i32_14 = arith.constant 8 : i32
    %39 = arith.cmpi slt, %37, %c8_i32_14 : i32
    %40 = arith.andi %38, %39 : i1
    %41 = arith.extui %40 : i1 to i32
    %c0_i32_15 = arith.constant 0 : i32
    %42 = arith.cmpi ne, %41, %c0_i32_15 : i32
    scf.if %42 {
      %67 = arith.index_cast %c4_i32 : i32 to index
      %c0_26 = arith.constant 0 : index
      %68 = vector.load %arg2[%67, %c0_26] : memref<8x10xf32, #tpu.memory_space<vmem>>, vector<1x10xf32>
      %69 = arith.index_cast %37 : i32 to index
      %c0_27 = arith.constant 0 : index
      %70 = vector.load %arg3[%69, %c0_27] : memref<8x10xf32, #tpu.memory_space<vmem>>, vector<1x10xf32>
      tpu.vector_store %arg3[%69, %c0_27], %68 {strides = array<i32>} : memref<8x10xf32, #tpu.memory_space<vmem>>, vector<1x10xf32>,
    } else {
    }
    %c5_i32 = arith.constant 5 : i32
    %43 = arith.index_cast %c5_i32 : i32 to index
    %44 = memref.load %arg1[%43] : memref<8xi32, #tpu.memory_space<smem>>
    %45 = arith.subi %44, %0 : i32
    %c0_i32_16 = arith.constant 0 : i32
    %46 = arith.cmpi sge, %45, %c0_i32_16 : i32
    %c8_i32_17 = arith.constant 8 : i32
    %47 = arith.cmpi slt, %45, %c8_i32_17 : i32
    %48 = arith.andi %46, %47 : i1
    %49 = arith.extui %48 : i1 to i32
    %c0_i32_18 = arith.constant 0 : i32
    %50 = arith.cmpi ne, %49, %c0_i32_18 : i32
    scf.if %50 {
      %67 = arith.index_cast %c5_i32 : i32 to index
      %c0_26 = arith.constant 0 : index
      %68 = vector.load %arg2[%67, %c0_26] : memref<8x10xf32, #tpu.memory_space<vmem>>, vector<1x10xf32>
      %69 = arith.index_cast %45 : i32 to index
      %c0_27 = arith.constant 0 : index
      %70 = vector.load %arg3[%69, %c0_27] : memref<8x10xf32, #tpu.memory_space<vmem>>, vector<1x10xf32>
      tpu.vector_store %arg3[%69, %c0_27], %68 {strides = array<i32>} : memref<8x10xf32, #tpu.memory_space<vmem>>, vector<1x10xf32>,
    } else {
    }
    %c6_i32 = arith.constant 6 : i32
    %51 = arith.index_cast %c6_i32 : i32 to index
    %52 = memref.load %arg1[%51] : memref<8xi32, #tpu.memory_space<smem>>
    %53 = arith.subi %52, %0 : i32
    %c0_i32_19 = arith.constant 0 : i32
    %54 = arith.cmpi sge, %53, %c0_i32_19 : i32
    %c8_i32_20 = arith.constant 8 : i32
    %55 = arith.cmpi slt, %53, %c8_i32_20 : i32
    %56 = arith.andi %54, %55 : i1
    %57 = arith.extui %56 : i1 to i32
    %c0_i32_21 = arith.constant 0 : i32
    %58 = arith.cmpi ne, %57, %c0_i32_21 : i32
    scf.if %58 {
      %67 = arith.index_cast %c6_i32 : i32 to index
      %c0_26 = arith.constant 0 : index
      %68 = vector.load %arg2[%67, %c0_26] : memref<8x10xf32, #tpu.memory_space<vmem>>, vector<1x10xf32>
      %69 = arith.index_cast %53 : i32 to index
      %c0_27 = arith.constant 0 : index
      %70 = vector.load %arg3[%69, %c0_27] : memref<8x10xf32, #tpu.memory_space<vmem>>, vector<1x10xf32>
      tpu.vector_store %arg3[%69, %c0_27], %68 {strides = array<i32>} : memref<8x10xf32, #tpu.memory_space<vmem>>, vector<1x10xf32>,
    } else {
    }
    %c7_i32 = arith.constant 7 : i32
    %59 = arith.index_cast %c7_i32 : i32 to index
    %60 = memref.load %arg1[%59] : memref<8xi32, #tpu.memory_space<smem>>
    %61 = arith.subi %60, %0 : i32
    %c0_i32_22 = arith.constant 0 : i32
    %62 = arith.cmpi sge, %61, %c0_i32_22 : i32
    %c8_i32_23 = arith.constant 8 : i32
    %63 = arith.cmpi slt, %61, %c8_i32_23 : i32
    %64 = arith.andi %62, %63 : i1
    %65 = arith.extui %64 : i1 to i32
    %c0_i32_24 = arith.constant 0 : i32
    %66 = arith.cmpi ne, %65, %c0_i32_24 : i32
    scf.if %66 {
      %67 = arith.index_cast %c7_i32 : i32 to index
      %c0_26 = arith.constant 0 : index
      %68 = vector.load %arg2[%67, %c0_26] : memref<8x10xf32, #tpu.memory_space<vmem>>, vector<1x10xf32>
      %69 = arith.index_cast %61 : i32 to index
      %c0_27 = arith.constant 0 : index
      %70 = vector.load %arg3[%69, %c0_27] : memref<8x10xf32, #tpu.memory_space<vmem>>, vector<1x10xf32>
      tpu.vector_store %arg3[%69, %c0_27], %68 {strides = array<i32>} : memref<8x10xf32, #tpu.memory_space<vmem>>, vector<1x10xf32>,
    } else {
    }
    %c8_i32_25 = arith.constant 8 : i32
    return
  }
  func.func @transform_0(%arg0: i32, %arg1: memref<8xi32, #tpu.memory_space<smem>>) -> (i32, i32) {
    %c0_i32 = arith.constant 0 : i32
    %c0_i32_0 = arith.constant 0 : i32
    %c0_i32_1 = arith.constant 0 : i32
    return %c0_i32, %c0_i32_0 : i32, i32
  }
  func.func @transform_1(%arg0: i32, %arg1: memref<8xi32, #tpu.memory_space<smem>>) -> (i32, i32) {
    %c0_i32 = arith.constant 0 : i32
    %c0_i32_0 = arith.constant 0 : i32
    return %arg0, %c0_i32 : i32, i32
  }
}

</mosaic_0001>

<llo_original>
// kernel: tpu_custom_call.1
$region0: #{tpu_custom_call.1}
  #allocation0 [shape = 'u32[]', space=smem, size = 0x4, offset = 0x4, fixed_abs, tag = 'smem constant byte address 0x4 - core index']
  #allocation1 [shape = 'u32[144,128]{1,0:T(1,128)}', space=vmem, size = 0x12000, scoped, tag = 'internal scratch']
  #allocation2 [shape = 's32[1]{0}', space=sflag, size = 0x4, scoped, tag = 'scoped memory for tpu_custom_call.1']
  #allocation3 [shape = 'u8[512]{0}', space=smem, size = 0x200, scoped, tag = 'prefetched SMEM operand 0']
  %s0 = inlined_call_operand.hbm [shape: s32[8], index: 0, kind: input, shape index: {}]
  %s1 = inlined_call_operand.hbm [shape: f32[8,10], index: 1, kind: input, shape index: {}]
  %s2 = inlined_call_operand.hbm [shape: f32[16,10], index: 2, kind: output, shape index: {}]
  %s3 = sld [smem:[#allocation0]]
  $region73: #{tpu_custom_call.1} parent=0
    _
  %s5 = ssub.s32 1, %s3
  %s6 = scalar_select 0, %s5, %s3
  %8 = dma.hbm_to_smem %s0, 16, [#allocation3], [#allocation2]
  %9 = dma.done [#allocation2], 16
  %10 = sfence
  $region1: #{tpu_custom_call.1} parent=0
    #allocation4 [shape = 'u8[4096]{0}', space=vmem, size = 0x1000, scoped, tag = 'input window, operand 1, single buffered']
    #allocation5 [shape = 's32[2]{0}', space=sflag, size = 0x8, scoped, tag = 'scoped memory for tpu_custom_call.1']
    #allocation6 [shape = 's32[2]{0}', space=sflag, size = 0x8, scoped, tag = 'scoped memory for tpu_custom_call.1']
    #allocation7 [shape = 'u8[8192]{0}', space=vmem, size = 0x2000, scoped, tag = 'output window, operand 0']
    %11 = vsyncpa [#allocation5], 0
    %12 = vsyncpa [#allocation6], 0
    %s13 = scalar_lea.sflag [#allocation6], 1
    %14 = vsyncpa %s13, 0
    loop: start=0, step=1, limit=4
    $region2: #{tpu_custom_call.1} parent=1 // loop_pre_header
      _
    $region3: #{tpu_custom_call.1} parent=1 // loop_header
      %s16 = sphi 0, %s20
      %p17 = scmp.ge.s32.totalorder %s16, 4
      %s24 = sphi 0, %s24
      %s26 = sphi 0, %s24
      %s27 = sphi 0, %s26
      %s41 = sphi 0, %s27
      %s47 = sphi 0, %s49
      %s50 = sphi 0, %s47
      %s51 = sphi 0, %s50
      %s67 = sphi 0, %s51
    $region4: #{tpu_custom_call.1} parent=1 // loop_header_branch
      %19 = sbr.rel (%p17) target = $region8
    $region5: #{tpu_custom_call.1} parent=1 // loop_body
      %s21 = ssub.s32 %s16, 1
      %s22 = ssub.s32 %s16, 2
      %s23 = sadd.s32 %s16, 1
      %s25 = sadd.s32 %s24, 1
      %p28 = scmp.eq.s32.totalorder %s16, 1
      %p29 = scmp.ne.s32.totalorder %s24, %s26
      %p30 = scmp.eq.s32.totalorder %s16, 0
      %p31 = por %p29, %p30
      %p32 = scmp.ne.s32.totalorder %s24, %s26
      %p33 = scmp.eq.s32.totalorder %s21, 1
      %p34 = por %p32, %p33
      %p35 = scmp.ne.s32.totalorder %s26, %s27
      %p36 = scmp.eq.s32.totalorder %s21, 0
      %p37 = por %p35, %p36
      %p38 = scmp.ne.s32.totalorder %s26, %s27
      %p39 = scmp.eq.s32.totalorder %s22, 1
      %p40 = por %p38, %p39
      %p42 = scmp.ne.s32.totalorder %s27, %s41
      %p43 = scmp.eq.s32.totalorder %s22, 0
      %p44 = por %p42, %p43
      %s45 = ssub.s32 %s16, %s23
      %p46 = scmp.eq.s32.totalorder %s45, 0
      %s48 = sadd.s32 %s47, 1
      %s49 = scalar_select %p46, %s47, %s48
      %p52 = pneg %p46
      %p53 = scmp.eq.s32.totalorder %s16, 1
      %p54 = por %p52, %p53
      %p55 = scmp.ne.s32.totalorder %s47, %s50
      %p56 = scmp.eq.s32.totalorder %s16, 0
      %p57 = por %p55, %p56
      %p58 = scmp.ne.s32.totalorder %s47, %s50
      %p59 = scmp.eq.s32.totalorder %s21, 1
      %p60 = por %p58, %p59
      %p61 = scmp.ne.s32.totalorder %s50, %s51
      %p62 = scmp.eq.s32.totalorder %s21, 0
      %p63 = por %p61, %p62
      %p64 = scmp.ne.s32.totalorder %s50, %s51
      %p65 = scmp.eq.s32.totalorder %s22, 1
      %p66 = por %p64, %p65
      %p68 = scmp.ne.s32.totalorder %s51, %s67
      %p69 = scmp.eq.s32.totalorder %s22, 0
      %p70 = por %p68, %p69
      %p71 = scmp.le.s32.totalorder 1, %s16
      %p72 = scmp.lt.s32.totalorder %s16, 3
      %p73 = pnand %p71, %p72
      %p74 = pneg %p73
      // Predicated region
      $region9: #{tpu_custom_call.1} parent=5 // pred_check
        _
      $region10: #{tpu_custom_call.1} parent=5 // pred_check_branch
        %76 = sbr.rel (%p73) target = $region12
      $region11: #{tpu_custom_call.1} parent=5 // pred_region
        %s77 = ssub.s32 %s16, 1
        // Predicated region
        $region13: #{tpu_custom_call.1} parent=11 // pred_check
          %p78 = pneg %p37
        $region14: #{tpu_custom_call.1} parent=11 // pred_check_branch
          %80 = sbr.rel (%p78) target = $region16
        $region15: #{tpu_custom_call.1} parent=11 // pred_region
          %s82 = ssub.s32 128, 128
          %83 = vsyncadd [#allocation5], %s82
          %s85 = sshll.u32 [#allocation4], 4
          %s86 = int_to_ptr.vmem [resolvable:$true] %s85
          %88 = dma.hbm_to_vmem [thread:$0]  %s1, 128, %s86, [#allocation5]
        $region16: #{tpu_custom_call.1} parent=11 // pred_fallthru
          _
      $region12: #{tpu_custom_call.1} parent=5 // pred_fallthru
        _
      %p89 = scmp.lt.s32.totalorder %s16, 2
      // Predicated region
      $region17: #{tpu_custom_call.1} parent=5 // pred_check
        %p90 = pneg %p89
      $region18: #{tpu_custom_call.1} parent=5 // pred_check_branch
        %92 = sbr.rel (%p90) target = $region20
      $region19: #{tpu_custom_call.1} parent=5 // pred_region
        _
      $region20: #{tpu_custom_call.1} parent=5 // pred_fallthru
        _
      %p93 = scmp.le.s32.totalorder 1, %s16
      %p94 = scmp.lt.s32.totalorder %s16, 3
      %p95 = pnand %p93, %p94
      %p96 = pneg %p95
      // Predicated region
      $region21: #{tpu_custom_call.1} parent=5 // pred_check
        _
      $region22: #{tpu_custom_call.1} parent=5 // pred_check_branch
        %98 = sbr.rel (%p95) target = $region24
      $region23: #{tpu_custom_call.1} parent=5 // pred_region
        %s99 = ssub.s32 %s16, 1
        // Predicated region
        $region25: #{tpu_custom_call.1} parent=23 // pred_check
          %p100 = pneg %p37
        $region26: #{tpu_custom_call.1} parent=23 // pred_check_branch
          %102 = sbr.rel (%p100) target = $region28
        $region27: #{tpu_custom_call.1} parent=23 // pred_region
          %103 = dma.done [#allocation5], 128
        $region28: #{tpu_custom_call.1} parent=23 // pred_fallthru
          _
        %p104 = pneg %p37
        %p105 = pneg %p34
        %p106 = pneg %p63
        %p107 = pneg %p60
        %s108 = sand.u32 %s50, 1
        %s109 = scalar_lea.sflag [#allocation6], %s108
        %s110 = sand.u32 %s50, 1
        %s111 = smul.addr %s110, 8
        %s112 = scalar_lea.vmem [#allocation7], %s111
        %s113 = smul.u32 %s21, 8
        %vm114 = vcmask 80896
        %115 = vst.msk [vmem:[%s112] sm:$0xff] %vm114, 0.0
        %s116 = sld [smem:[#allocation3]]
        %s117 = ssub.s32 %s116, %s113
        %p118 = scmp.ge.s32.totalorder %s117, 0
        %p119 = scmp.lt.s32.totalorder %s117, 8
        %p120 = pnand %p118, %p119
        %p121 = pneg %p120
        // Predicated region
        $region29: #{tpu_custom_call.1} parent=23 // pred_check
          _
        $region30: #{tpu_custom_call.1} parent=23 // pred_check_branch
          %123 = sbr.rel (%p120) target = $region32
        $region31: #{tpu_custom_call.1} parent=23 // pred_region
          %v124 = vld [vmem:[#allocation4] sm:$0x1]
          %s125 = scalar_lea.vmem %s112, %s117 [#allocation7]
          %vm126 = vcmask 73728
          %127 = vst.msk [vmem:[%s125] sm:$0x1] %vm126, %v124
        $region32: #{tpu_custom_call.1} parent=23 // pred_fallthru
          _
        %s128 = sld [smem:[#allocation3 + $0x1]]
        %s129 = ssub.s32 %s128, %s113
        %p130 = scmp.ge.s32.totalorder %s129, 0
        %p131 = scmp.lt.s32.totalorder %s129, 8
        %p132 = pnand %p130, %p131
        %p133 = pneg %p132
        // Predicated region
        $region33: #{tpu_custom_call.1} parent=23 // pred_check
          _
        $region34: #{tpu_custom_call.1} parent=23 // pred_check_branch
          %135 = sbr.rel (%p132) target = $region36
        $region35: #{tpu_custom_call.1} parent=23 // pred_region
          %v136 = vld [vmem:[#allocation4 + $0x1] sm:$0x1]
          %s137 = scalar_lea.vmem %s112, %s129 [#allocation7]
          %vm138 = vcmask 73728
          %139 = vst.msk [vmem:[%s137] sm:$0x1] %vm138, %v136
        $region36: #{tpu_custom_call.1} parent=23 // pred_fallthru
          _
        %s140 = sld [smem:[#allocation3 + $0x2]]
        %s141 = ssub.s32 %s140, %s113
        %p142 = scmp.ge.s32.totalorder %s141, 0
        %p143 = scmp.lt.s32.totalorder %s141, 8
        %p144 = pnand %p142, %p143
        %p145 = pneg %p144
        // Predicated region
        $region37: #{tpu_custom_call.1} parent=23 // pred_check
          _
        $region38: #{tpu_custom_call.1} parent=23 // pred_check_branch
          %147 = sbr.rel (%p144) target = $region40
        $region39: #{tpu_custom_call.1} parent=23 // pred_region
          %v148 = vld [vmem:[#allocation4 + $0x2] sm:$0x1]
          %s149 = scalar_lea.vmem %s112, %s141 [#allocation7]
          %vm150 = vcmask 73728
          %151 = vst.msk [vmem:[%s149] sm:$0x1] %vm150, %v148
        $region40: #{tpu_custom_call.1} parent=23 // pred_fallthru
          _
        %s152 = sld [smem:[#allocation3 + $0x3]]
        %s153 = ssub.s32 %s152, %s113
        %p154 = scmp.ge.s32.totalorder %s153, 0
        %p155 = scmp.lt.s32.totalorder %s153, 8
        %p156 = pnand %p154, %p155
        %p157 = pneg %p156
        // Predicated region
        $region41: #{tpu_custom_call.1} parent=23 // pred_check
          _
        $region42: #{tpu_custom_call.1} parent=23 // pred_check_branch
          %159 = sbr.rel (%p156) target = $region44
        $region43: #{tpu_custom_call.1} parent=23 // pred_region
          %v160 = vld [vmem:[#allocation4 + $0x3] sm:$0x1]
          %s161 = scalar_lea.vmem %s112, %s153 [#allocation7]
          %vm162 = vcmask 73728
          %163 = vst.msk [vmem:[%s161] sm:$0x1] %vm162, %v160
        $region44: #{tpu_custom_call.1} parent=23 // pred_fallthru
          _
        %s164 = sld [smem:[#allocation3 + $0x4]]
        %s165 = ssub.s32 %s164, %s113
        %p166 = scmp.ge.s32.totalorder %s165, 0
        %p167 = scmp.lt.s32.totalorder %s165, 8
        %p168 = pnand %p166, %p167
        %p169 = pneg %p168
        // Predicated region
        $region45: #{tpu_custom_call.1} parent=23 // pred_check
          _
        $region46: #{tpu_custom_call.1} parent=23 // pred_check_branch
          %171 = sbr.rel (%p168) target = $region48
        $region47: #{tpu_custom_call.1} parent=23 // pred_region
          %v172 = vld [vmem:[#allocation4 + $0x4] sm:$0x1]
          %s173 = scalar_lea.vmem %s112, %s165 [#allocation7]
          %vm174 = vcmask 73728
          %175 = vst.msk [vmem:[%s173] sm:$0x1] %vm174, %v172
        $region48: #{tpu_custom_call.1} parent=23 // pred_fallthru
          _
        %s176 = sld [smem:[#allocation3 + $0x5]]
        %s177 = ssub.s32 %s176, %s113
        %p178 = scmp.ge.s32.totalorder %s177, 0
        %p179 = scmp.lt.s32.totalorder %s177, 8
        %p180 = pnand %p178, %p179
        %p181 = pneg %p180
        // Predicated region
        $region49: #{tpu_custom_call.1} parent=23 // pred_check
          _
        $region50: #{tpu_custom_call.1} parent=23 // pred_check_branch
          %183 = sbr.rel (%p180) target = $region52
        $region51: #{tpu_custom_call.1} parent=23 // pred_region
          %v184 = vld [vmem:[#allocation4 + $0x5] sm:$0x1]
          %s185 = scalar_lea.vmem %s112, %s177 [#allocation7]
          %vm186 = vcmask 73728
          %187 = vst.msk [vmem:[%s185] sm:$0x1] %vm186, %v184
        $region52: #{tpu_custom_call.1} parent=23 // pred_fallthru
          _
        %s188 = sld [smem:[#allocation3 + $0x6]]
        %s189 = ssub.s32 %s188, %s113
        %p190 = scmp.ge.s32.totalorder %s189, 0
        %p191 = scmp.lt.s32.totalorder %s189, 8
        %p192 = pnand %p190, %p191
        %p193 = pneg %p192
        // Predicated region
        $region53: #{tpu_custom_call.1} parent=23 // pred_check
          _
        $region54: #{tpu_custom_call.1} parent=23 // pred_check_branch
          %195 = sbr.rel (%p192) target = $region56
        $region55: #{tpu_custom_call.1} parent=23 // pred_region
          %v196 = vld [vmem:[#allocation4 + $0x6] sm:$0x1]
          %s197 = scalar_lea.vmem %s112, %s189 [#allocation7]
          %vm198 = vcmask 73728
          %199 = vst.msk [vmem:[%s197] sm:$0x1] %vm198, %v196
        $region56: #{tpu_custom_call.1} parent=23 // pred_fallthru
          _
        %s200 = sld [smem:[#allocation3 + $0x7]]
        %s201 = ssub.s32 %s200, %s113
        %p202 = scmp.ge.s32.totalorder %s201, 0
        %p203 = scmp.lt.s32.totalorder %s201, 8
        %p204 = pnand %p202, %p203
        %p205 = pneg %p204
        // Predicated region
        $region57: #{tpu_custom_call.1} parent=23 // pred_check
          _
        $region58: #{tpu_custom_call.1} parent=23 // pred_check_branch
          %207 = sbr.rel (%p204) target = $region60
        $region59: #{tpu_custom_call.1} parent=23 // pred_region
          %v208 = vld [vmem:[#allocation4 + $0x7] sm:$0x1]
          %s209 = scalar_lea.vmem %s112, %s201 [#allocation7]
          %vm210 = vcmask 73728
          %211 = vst.msk [vmem:[%s209] sm:$0x1] %vm210, %v208
        $region60: #{tpu_custom_call.1} parent=23 // pred_fallthru
          _
        %s212 = sand.u32 %s50, 1
        %s213 = scalar_lea.sflag [#allocation6], %s212
        %s214 = sand.u32 %s50, 1
        %s215 = smul.addr %s214, 8
        %s216 = scalar_lea.vmem [#allocation7], %s215
        // Predicated region
        $region61: #{tpu_custom_call.1} parent=23 // pred_check
          %p217 = pneg %p60
        $region62: #{tpu_custom_call.1} parent=23 // pred_check_branch
          %219 = sbr.rel (%p217) target = $region64
        $region63: #{tpu_custom_call.1} parent=23 // pred_region
          %s221 = ssub.s32 128, 128
          %222 = vsyncadd %s213, %s221
          %s223 = smul.addr %s21, 128
          %s224 = scalar_lea.hbm %s2, %s223
          %s226 = sshll.u32 %s216, 4
          %s227 = int_to_ptr.vmem [resolvable:$true] %s226
          %229 = dma.vmem_to_hbm [thread:$0]  %s227, 128, %s224, %s213
        $region64: #{tpu_custom_call.1} parent=23 // pred_fallthru
          _
      $region24: #{tpu_custom_call.1} parent=5 // pred_fallthru
        _
      %p230 = scmp.le.s32.totalorder 2, %s16
      // Predicated region
      $region65: #{tpu_custom_call.1} parent=5 // pred_check
        %p231 = pneg %p230
      $region66: #{tpu_custom_call.1} parent=5 // pred_check_branch
        %233 = sbr.rel (%p231) target = $region68
      $region67: #{tpu_custom_call.1} parent=5 // pred_region
        %s234 = ssub.s32 %s16, 2
        // Predicated region
        $region69: #{tpu_custom_call.1} parent=67 // pred_check
          %p235 = pneg %p66
        $region70: #{tpu_custom_call.1} parent=67 // pred_check_branch
          %237 = sbr.rel (%p235) target = $region72
        $region71: #{tpu_custom_call.1} parent=67 // pred_region
          %s238 = sand.u32 %s51, 1
          %s239 = scalar_lea.sflag [#allocation6], %s238
          %s240 = sand.u32 %s51, 1
          %s241 = smul.addr %s240, 8
          %s242 = scalar_lea.vmem [#allocation7], %s241
          %243 = dma.done %s239, 128
        $region72: #{tpu_custom_call.1} parent=67 // pred_fallthru
          _
      $region68: #{tpu_custom_call.1} parent=5 // pred_fallthru
        _
    $region6: #{tpu_custom_call.1} parent=1 // loop_footer
      %s20 = sadd.s32 1, %s16
    $region7: #{tpu_custom_call.1} parent=1 // loop_footer_branch
      %15 = sbr.rel target = $region3
    $region8: #{tpu_custom_call.1} parent=1 // loop_exit
      _
    %244 = vsyncpa [#allocation5], 1
    %s245 = scalar_lea.sflag [#allocation5], 1
    %246 = vsyncpa %s245, 1
    %247 = vsyncpa [#allocation6], 1
    %s248 = scalar_lea.sflag [#allocation6], 1
    %249 = vsyncpa %s248, 1

</llo_original>
